<compile_context>
chip_gen: v5e
topology: v5e:2x2
jax: 0.10.0
libtpu: 0.0.40
codegen_flags: <defaults>
</compile_context>

<pallas_src>
from functools import partial

import jax
import jax.numpy as jnp
from jax import lax
from jax.experimental import pallas as pl
from jax.experimental.pallas import tpu as pltpu


_NEG = -1e30  # bias for padded class lanes -> exp() underflows to 0 in the softmax


def _round_up(n, m):
    return ((n + m - 1) // m) * m


def _nash_mlp_kernel(x_ref, w12_ref, b12_ref, w3_ref, b3_ref, o_ref, *, n, compact):
    # Hidden layer (layers 1+2 folded at pack time) + LeakyReLU(0.01): (TB, 2H)
    h = jnp.dot(x_ref[...], w12_ref[...], preferred_element_type=jnp.float32)
    h = h + b12_ref[...]
    h = jnp.maximum(h, 0.01 * h)          # LeakyReLU, single vmax per element

    # Output layer (both players packed into one lane-dense weight): (TB, Wout)
    logits = jnp.dot(h.astype(jnp.bfloat16), w3_ref[...],
                     preferred_element_type=jnp.float32) + b3_ref[...]

    if compact:
        # Both players share one 128-lane block: player p at lanes [p*n,(p+1)*n).
        # Per-player log_softmax via lane-index masks; unused lanes already
        # carry a -1e30 bias so they never win the max / contribute to the sum.
        lane = lax.broadcasted_iota(jnp.int32, logits.shape, 1)
        out = logits
        for p in range(2):                         # unrolled, static
            mask = (lane >= p * n) & (lane < (p + 1) * n)
            lg = jnp.where(mask, logits, _NEG)
            m = jnp.max(lg, axis=-1, keepdims=True)
            lse = m + jnp.log(jnp.sum(jnp.exp(lg - m), axis=-1, keepdims=True))
            out = jnp.where(mask, logits - lse, out)
        o_ref[...] = out.astype(o_ref.dtype)
    else:
        # Wide layout: per-player 128-aligned halves of width npad each.
        npad = o_ref.shape[-1] // 2
        for p in range(2):                         # unrolled, 128-aligned slices
            lg = logits[:, p * npad:(p + 1) * npad]
            m = jnp.max(lg, axis=-1, keepdims=True)
            sh = lg - m
            lse = jnp.log(jnp.sum(jnp.exp(sh), axis=-1, keepdims=True))
            o_ref[:, p * npad:(p + 1) * npad] = (sh - lse).astype(o_ref.dtype)


def pack_params(params):
    """Pack per-player stacked params into fused, lane-dense kernel operands.

    params: dict with w1 (2,E,H), b1 (2,1,H), w2 (2,H,H), b2 (2,1,H),
            w3 (2,H,N), b3 (2,1,N); weights stored (in, out) so kernel does x @ W.
    """
    w1, b1 = params["w1"], params["b1"]
    w2, b2 = params["w2"], params["b2"]
    w3, b3 = params["w3"], params["b3"]
    H = w1.shape[2]
    N = w3.shape[2]

    # Fold the activation-free Linear-1 into Linear-2, in f32, per player:
    #   x@W1+b1 -> (x@W1+b1)@W2+b2 == x@(W1@W2) + (b1@W2 + b2)
    w12 = jnp.einsum("peh,phk->pek", w1, w2)          # (2, E, H)
    b12 = jnp.einsum("pah,phk->pak", b1, w2) + b2     # (2, 1, H)

    # Players concatenated along the hidden (output) dim -> single wide matmul.
    w12c = jnp.concatenate([w12[0], w12[1]], axis=1)  # (E, 2H)
    b12c = jnp.concatenate([b12[0], b12[1]], axis=1)  # (1, 2H)

    # Output layer packing: compact single 128-lane block when both players fit,
    # otherwise 128-aligned per-player halves (block-diagonal layout).
    compact = (2 * N) <= 128
    if compact:
        wout = 128
        offsets = (0, N)
    else:
        npad = _round_up(N, 128)
        wout = 2 * npad
        offsets = (0, npad)

    w3p = jnp.zeros((2 * H, wout), jnp.float32)
    b3p = jnp.full((1, wout), _NEG, jnp.float32)      # padded lanes -> -inf-ish
    for p in range(2):
        w3p = w3p.at[p * H:(p + 1) * H, offsets[p]:offsets[p] + N].set(w3[p])
        b3p = b3p.at[:, offsets[p]:offsets[p] + N].set(b3[p])

    return {
        "w12": w12c.astype(jnp.bfloat16), "b12": b12c.astype(jnp.float32),
        "w3": w3p.astype(jnp.bfloat16), "b3": b3p.astype(jnp.float32),
        "N": N, "compact": compact, "offsets": offsets, "wout": wout,
    }


def nash_predictor_forward(x, packed, *, batch_tile=1024, core_parallel=False):
    """x: (B, E) float32. packed: output of pack_params. Returns (logpi1, logpi2)."""
    B, E = x.shape
    N = packed["wout"] and packed["N"]
    wout = packed["wout"]
    off1, off2 = packed["offsets"]

    # Cast x in the wrapper: halves the x HBM->VMEM DMA and removes the
    # in-kernel f32->bf16 cast (matters most on v5e, no bf16 VALU there).
    x = x.astype(jnp.bfloat16)

    # Batch tile: multiple of 16 (bf16 sublane packing), large to amortize the
    # per-grid-step overhead; clamp to the (rounded) batch so tiny batches
    # don't pay for padding.
    TB = _round_up(min(batch_tile, _round_up(B, 16)), 16)
    Bp = _round_up(B, TB)
    if Bp != B:
        x = jnp.pad(x, ((0, Bp - B), (0, 0)))

    H2 = packed["w12"].shape[1]                        # 2*H
    weight_bytes = sum(int(packed[k].size) * packed[k].dtype.itemsize
                       for k in ("w12", "b12", "w3", "b3"))
    cost = pl.CostEstimate(
        flops=2 * Bp * (E * H2 + H2 * wout),
        transcendentals=Bp * (2 * wout if packed["compact"] else wout),
        bytes_accessed=int(x.size) * x.dtype.itemsize + weight_bytes + Bp * wout * 4,
    )

    kernel = partial(_nash_mlp_kernel, n=N, compact=packed["compact"])
    # On v7x, pass core_parallel=True so both TensorCores split the batch axis.
    sem = (pltpu.CORE_PARALLEL if core_parallel else pltpu.PARALLEL,)

    out = pl.pallas_call(
        kernel,
        out_shape=jax.ShapeDtypeStruct((Bp, wout), jnp.float32),
        grid=(Bp // TB,),
        in_specs=[
            pl.BlockSpec((TB, E), lambda i: (i, 0)),               # x tile (bf16)
            pl.BlockSpec(packed["w12"].shape, lambda i: (0, 0)),   # W12 (E, 2H)
            pl.BlockSpec(packed["b12"].shape, lambda i: (0, 0)),   # b12 (1, 2H)
            pl.BlockSpec(packed["w3"].shape, lambda i: (0, 0)),    # W3  (2H, Wout)
            pl.BlockSpec(packed["b3"].shape, lambda i: (0, 0)),    # b3  (1, Wout)
        ],
        out_specs=pl.BlockSpec((TB, wout), lambda i: (i, 0)),
        compiler_params=pltpu.CompilerParams(
            dimension_semantics=sem,
            vmem_limit_bytes=32 * 1024 * 1024,   # explicit; plenty on v5e/v6e/v7x
        ),
        cost_estimate=cost,
    )(x, packed["w12"], packed["b12"], packed["w3"], packed["b3"])

    logpi1 = out[:B, off1:off1 + N]
    logpi2 = out[:B, off2:off2 + N]
    return logpi1, logpi2


def init_params(key, embedding_size, N, hidden=128):
    """Deterministic PyTorch-Linear-style init, stacked for the 2 players.

    Weights are stored as (in, out) so the kernel computes x @ W.
    """
    def linear(k, fan_in, fan_out):
        kw, kb = jax.random.split(k)
        bound = 1.0 / jnp.sqrt(jnp.float32(fan_in))
        w = jax.random.uniform(kw, (fan_in, fan_out), jnp.float32, -bound, bound)
        b = jax.random.uniform(kb, (1, fan_out), jnp.float32, -bound, bound)
        return w, b

    keys = jax.random.split(key, 6)   # 3 layers x 2 players
    w1s, b1s, w2s, b2s, w3s, b3s = [], [], [], [], [], []
    for p in range(2):
        w1, b1 = linear(keys[3 * p + 0], embedding_size, hidden)
        w2, b2 = linear(keys[3 * p + 1], hidden, hidden)
        w3, b3 = linear(keys[3 * p + 2], hidden, N)
        w1s.append(w1); b1s.append(b1)
        w2s.append(w2); b2s.append(b2)
        w3s.append(w3); b3s.append(b3)

    return {
        "w1": jnp.stack(w1s), "b1": jnp.stack(b1s),
        "w2": jnp.stack(w2s), "b2": jnp.stack(b2s),
        "w3": jnp.stack(w3s), "b3": jnp.stack(b3s),
    }


def _reference_forward(x, params):
    """Pure-JAX f32 reference matching the PyTorch module exactly."""
    outs = []
    for p in range(2):
        h1 = x @ params["w1"][p] + params["b1"][p]            # no activation
        h2 = h1 @ params["w2"][p] + params["b2"][p]
        h2 = jnp.where(h2 >= 0, h2, 0.01 * h2)                # LeakyReLU(0.01)
        logits = h2 @ params["w3"][p] + params["b3"][p]
        outs.append(jax.nn.log_softmax(logits, axis=1))
    return tuple(outs)


if __name__ == "__main__":
    B, E, N = 8, 32, 8
    key = jax.random.PRNGKey(0)
    kx, kp = jax.random.split(key)

    x = jax.random.normal(kx, (B, E), jnp.float32)
    params = init_params(kp, E, N)
    packed = pack_params(params)

    logpi1, logpi2 = nash_predictor_forward(x, packed)
    jax.block_until_ready((logpi1, logpi2))

    ref1, ref2 = _reference_forward(x, params)
    assert logpi1.shape == (B, N) and logpi2.shape == (B, N)
    # bf16 matmul operands with f32 accumulation -> relaxed tolerance vs f32 ref.
    assert jnp.allclose(logpi1, ref1, atol=2e-2, rtol=2e-2)
    assert jnp.allclose(logpi2, ref2, atol=2e-2, rtol=2e-2)
    # Outputs are valid log-probability rows.
    assert jnp.allclose(jnp.exp(logpi1).sum(-1), 1.0, atol=1e-3)
    assert jnp.allclose(jnp.exp(logpi2).sum(-1), 1.0, atol=1e-3)

    print("KERNEL_OK")
</pallas_src>

<mosaic_0001>
module attributes {stable_mosaic.version = 11 : i64} {
  func.func @_nash_mlp_kernel(%arg0: i32, %arg1: memref<16x32xbf16, #tpu.memory_space<vmem>>, %arg2: memref<32x256xbf16, #tpu.memory_space<vmem>>, %arg3: memref<1x256xf32, #tpu.memory_space<vmem>>, %arg4: memref<256x128xbf16, #tpu.memory_space<vmem>>, %arg5: memref<1x128xf32, #tpu.memory_space<vmem>>, %arg6: memref<16x128xf32, #tpu.memory_space<vmem>>) attributes {dimension_semantics = [#tpu.dimension_semantics<parallel>], iteration_bounds = array<i64: 1>, scalar_prefetch = 0 : i64, scratch_operands = 0 : i64, tpu.core_type = #tpu.core_type<tc>, window_params = [{transform_indices = @transform_0, window_bounds = array<i64: 16, 32>}, {pipeline_mode = #tpu.pipeline_mode<synchronous>, transform_indices = @transform_1, window_bounds = array<i64: 32, 256>}, {pipeline_mode = #tpu.pipeline_mode<synchronous>, transform_indices = @transform_2, window_bounds = array<i64: 1, 256>}, {pipeline_mode = #tpu.pipeline_mode<synchronous>, transform_indices = @transform_3, window_bounds = array<i64: 256, 128>}, {pipeline_mode = #tpu.pipeline_mode<synchronous>, transform_indices = @transform_4, window_bounds = array<i64: 1, 128>}, {transform_indices = @transform_5, window_bounds = array<i64: 16, 128>}]} {
    %c0 = arith.constant 0 : index
    %c0_0 = arith.constant 0 : index
    %0 = vector.load %arg1[%c0, %c0_0] : memref<16x32xbf16, #tpu.memory_space<vmem>>, vector<16x32xbf16>
    %c0_1 = arith.constant 0 : index
    %c0_2 = arith.constant 0 : index
    %1 = vector.load %arg2[%c0_1, %c0_2] : memref<32x256xbf16, #tpu.memory_space<vmem>>, vector<32x256xbf16>
    %cst = arith.constant dense<0.000000e+00> : vector<16x256xf32>
    %2 = tpu.matmul %0, %1, %cst {dimension_numbers = #tpu.dot_dimension_numbers<[1], [0], [0], [1], [0, 0, 1, 1], [], []>} : vector<16x32xbf16>, vector<32x256xbf16>, vector<16x256xf32> -> vector<16x256xf32>
    %c0_3 = arith.constant 0 : index
    %c0_4 = arith.constant 0 : index
    %3 = vector.load %arg3[%c0_3, %c0_4] : memref<1x256xf32, #tpu.memory_space<vmem>>, vector<1x256xf32>
    %4 = vector.broadcast %3 : vector<1x256xf32> to vector<16x256xf32>
    %5 = arith.addf %2, %4 : vector<16x256xf32>
    %cst_5 = arith.constant 0.00999999977 : f32
    %6 = vector.broadcast %cst_5 : f32 to vector<16x256xf32>
    %7 = arith.mulf %6, %5 : vector<16x256xf32>
    %8 = arith.maximumf %5, %7 : vector<16x256xf32>
    %9 = arith.truncf %8 : vector<16x256xf32> to vector<16x256xbf16>
    %c0_6 = arith.constant 0 : index
    %c0_7 = arith.constant 0 : index
    %10 = vector.load %arg4[%c0_6, %c0_7] : memref<256x128xbf16, #tpu.memory_space<vmem>>, vector<256x128xbf16>
    %cst_8 = arith.constant dense<0.000000e+00> : vector<16x128xf32>
    %11 = tpu.matmul %9, %10, %cst_8 {dimension_numbers = #tpu.dot_dimension_numbers<[1], [0], [0], [1], [0, 0, 1, 1], [], []>} : vector<16x256xbf16>, vector<256x128xbf16>, vector<16x128xf32> -> vector<16x128xf32>
    %c0_9 = arith.constant 0 : index
    %c0_10 = arith.constant 0 : index
    %12 = vector.load %arg5[%c0_9, %c0_10] : memref<1x128xf32, #tpu.memory_space<vmem>>, vector<1x128xf32>
    %13 = vector.broadcast %12 : vector<1x128xf32> to vector<16x128xf32>
    %14 = arith.addf %11, %13 : vector<16x128xf32>
    %15 = tpu.iota {dimensions = array<i32: 1>} : vector<16x128xi32>
    %c0_i32 = arith.constant 0 : i32
    %16 = vector.broadcast %c0_i32 : i32 to vector<16x128xi32>
    %17 = arith.cmpi sge, %15, %16 : vector<16x128xi32>
    %c8_i32 = arith.constant 8 : i32
    %18 = vector.broadcast %c8_i32 : i32 to vector<16x128xi32>
    %19 = arith.cmpi slt, %15, %18 : vector<16x128xi32>
    %20 = arith.andi %17, %19 : vector<16x128xi1>
    %cst_11 = arith.constant -1.000000e+30 : f32
    %21 = vector.broadcast %cst_11 : f32 to vector<16x128xf32>
    %22 = arith.select %20, %14, %21 : vector<16x128xi1>, vector<16x128xf32>
    %cst_12 = arith.constant dense<0xFF800000> : vector<16xf32>
    %23 = vector.multi_reduction <maximumf>, %22, %cst_12 [1] : vector<16x128xf32> to vector<16xf32>
    %24 = vector.shape_cast %23 : vector<16xf32> to vector<16x1xf32>
    %25 = vector.broadcast %24 : vector<16x1xf32> to vector<16x128xf32>
    %26 = arith.subf %22, %25 : vector<16x128xf32>
    %27 = math.exp %26 : vector<16x128xf32>
    %cst_13 = arith.constant dense<0.000000e+00> : vector<16xf32>
    %28 = vector.multi_reduction <add>, %27, %cst_13 [1] : vector<16x128xf32> to vector<16xf32>
    %29 = vector.shape_cast %28 : vector<16xf32> to vector<16x1xf32>
    %30 = math.log %29 : vector<16x1xf32>
    %31 = arith.addf %24, %30 : vector<16x1xf32>
    %32 = vector.broadcast %31 : vector<16x1xf32> to vector<16x128xf32>
    %33 = arith.subf %14, %32 : vector<16x128xf32>
    %34 = arith.select %20, %33, %14 : vector<16x128xi1>, vector<16x128xf32>
    %c8_i32_14 = arith.constant 8 : i32
    %35 = vector.broadcast %c8_i32_14 : i32 to vector<16x128xi32>
    %36 = arith.cmpi sge, %15, %35 : vector<16x128xi32>
    %c16_i32 = arith.constant 16 : i32
    %37 = vector.broadcast %c16_i32 : i32 to vector<16x128xi32>
    %38 = arith.cmpi slt, %15, %37 : vector<16x128xi32>
    %39 = arith.andi %36, %38 : vector<16x128xi1>
    %cst_15 = arith.constant -1.000000e+30 : f32
    %40 = vector.broadcast %cst_15 : f32 to vector<16x128xf32>
    %41 = arith.select %39, %14, %40 : vector<16x128xi1>, vector<16x128xf32>
    %cst_16 = arith.constant dense<0xFF800000> : vector<16xf32>
    %42 = vector.multi_reduction <maximumf>, %41, %cst_16 [1] : vector<16x128xf32> to vector<16xf32>
    %43 = vector.shape_cast %42 : vector<16xf32> to vector<16x1xf32>
    %44 = vector.broadcast %43 : vector<16x1xf32> to vector<16x128xf32>
    %45 = arith.subf %41, %44 : vector<16x128xf32>
    %46 = math.exp %45 : vector<16x128xf32>
    %cst_17 = arith.constant dense<0.000000e+00> : vector<16xf32>
    %47 = vector.multi_reduction <add>, %46, %cst_17 [1] : vector<16x128xf32> to vector<16xf32>
    %48 = vector.shape_cast %47 : vector<16xf32> to vector<16x1xf32>
    %49 = math.log %48 : vector<16x1xf32>
    %50 = arith.addf %43, %49 : vector<16x1xf32>
    %51 = vector.broadcast %50 : vector<16x1xf32> to vector<16x128xf32>
    %52 = arith.subf %14, %51 : vector<16x128xf32>
    %53 = arith.select %39, %52, %34 : vector<16x128xi1>, vector<16x128xf32>
    %c0_18 = arith.constant 0 : index
    %c0_19 = arith.constant 0 : index
    %54 = vector.load %arg6[%c0_18, %c0_19] : memref<16x128xf32, #tpu.memory_space<vmem>>, vector<16x128xf32>
    tpu.vector_store %arg6[%c0_18, %c0_19], %53 {strides = array<i32>} : memref<16x128xf32, #tpu.memory_space<vmem>>, vector<16x128xf32>,
    return
  }
  func.func @transform_0(%arg0: i32) -> (i32, i32) {
    %c0_i32 = arith.constant 0 : i32
    %c0_i32_0 = arith.constant 0 : i32
    return %arg0, %c0_i32 : i32, i32
  }
  func.func @transform_1(%arg0: i32) -> (i32, i32) {
    %c0_i32 = arith.constant 0 : i32
    %c0_i32_0 = arith.constant 0 : i32
    %c0_i32_1 = arith.constant 0 : i32
    return %c0_i32, %c0_i32_0 : i32, i32
  }
  func.func @transform_2(%arg0: i32) -> (i32, i32) {
    %c0_i32 = arith.constant 0 : i32
    %c0_i32_0 = arith.constant 0 : i32
    %c0_i32_1 = arith.constant 0 : i32
    return %c0_i32, %c0_i32_0 : i32, i32
  }
  func.func @transform_3(%arg0: i32) -> (i32, i32) {
    %c0_i32 = arith.constant 0 : i32
    %c0_i32_0 = arith.constant 0 : i32
    %c0_i32_1 = arith.constant 0 : i32
    return %c0_i32, %c0_i32_0 : i32, i32
  }
  func.func @transform_4(%arg0: i32) -> (i32, i32) {
    %c0_i32 = arith.constant 0 : i32
    %c0_i32_0 = arith.constant 0 : i32
    %c0_i32_1 = arith.constant 0 : i32
    return %c0_i32, %c0_i32_0 : i32, i32
  }
  func.func @transform_5(%arg0: i32) -> (i32, i32) {
    %c0_i32 = arith.constant 0 : i32
    %c0_i32_0 = arith.constant 0 : i32
    return %arg0, %c0_i32 : i32, i32
  }
}

</mosaic_0001>

<llo_original>
// kernel: tpu_custom_call.1
$region0: #{tpu_custom_call.1}
  #allocation0 [shape = 'u32[]', space=smem, size = 0x4, offset = 0x4, fixed_abs, tag = 'smem constant byte address 0x4 - core index']
  #allocation1 [shape = 'u32[72,128]{1,0:T(1,128)}', space=vmem, size = 0x9000, scoped, tag = 'internal scratch']
  %s0 = inlined_call_operand.hbm [shape: bf16[16,32], index: 0, kind: input, shape index: {}]
  %s1 = inlined_call_operand.hbm [shape: bf16[32,256], index: 1, kind: input, shape index: {}]
  %s2 = inlined_call_operand.hbm [shape: f32[1,256], index: 2, kind: input, shape index: {}]
  %s3 = inlined_call_operand.hbm [shape: bf16[256,128], index: 3, kind: input, shape index: {}]
  %s4 = inlined_call_operand.vmem [shape: f32[1,128], index: 4, kind: input, shape index: {}]
  %s5 = inlined_call_operand.hbm [shape: f32[16,128], index: 5, kind: output, shape index: {}]
  %s6 = sld [smem:[#allocation0]]
  $region46: #{tpu_custom_call.1} parent=0
    _
  %s8 = ssub.s32 1, %s6
  %s9 = scalar_select 0, %s8, %s6
  $region1: #{tpu_custom_call.1} parent=0
    #allocation2 [shape = 'u8[4096]{0}', space=vmem, size = 0x1000, scoped, tag = 'input window, operand 0, single buffered']
    #allocation3 [shape = 's32[1]{0}', space=sflag, size = 0x4, scoped, tag = 'scoped memory for tpu_custom_call.1']
    #allocation4 [shape = 's32[1]{0}', space=sflag, size = 0x4, scoped, tag = 'scoped memory for tpu_custom_call.1']
    #allocation5 [shape = 'u8[16384]{0}', space=vmem, size = 0x4000, scoped, tag = 'input window, operand 1, single buffered']
    #allocation6 [shape = 's32[1]{0}', space=sflag, size = 0x4, scoped, tag = 'scoped memory for tpu_custom_call.1']
    #allocation7 [shape = 'u8[1024]{0}', space=vmem, size = 0x400, scoped, tag = 'input window, operand 2, single buffered']
    #allocation8 [shape = 'u8[65536]{0}', space=vmem, size = 0x10000, scoped, tag = 'input window, operand 3, single buffered']
    #allocation9 [shape = 's32[1]{0}', space=sflag, size = 0x4, scoped, tag = 'scoped memory for tpu_custom_call.1']
    #allocation10 [shape = 'u8[8192]{0}', space=vmem, size = 0x2000, scoped, tag = 'output window, operand 0, single buffered']
    %10 = vsyncpa [#allocation3], 0
    %11 = vsyncpa [#allocation6], 0
    %12 = vsyncpa [#allocation9], 0
    %13 = vsyncpa [#allocation4], 0
    // Predicated region
    $region2: #{tpu_custom_call.1} parent=1 // pred_check
      _
    $region3: #{tpu_custom_call.1} parent=1 // pred_check_branch
      %15 = sbr.rel (0) target = $region5
    $region4: #{tpu_custom_call.1} parent=1 // pred_region
      %17 = vsyncadd [#allocation3], 0
      %s18 = sshll.u32 %s0, 4
      %s19 = int_to_ptr.hbm [resolvable:$true] %s18
      %s20 = sshll.u32 [#allocation2], 4
      %s21 = int_to_ptr.vmem [resolvable:$true] %s20
      %26 = dma.hbm_to_vmem [thread:$0]  %s19, 128, %s21, [#allocation3], 64, 64, 4
    $region5: #{tpu_custom_call.1} parent=1 // pred_fallthru
      _
    // Predicated region
    $region6: #{tpu_custom_call.1} parent=1 // pred_check
      _
    $region7: #{tpu_custom_call.1} parent=1 // pred_check_branch
      %28 = sbr.rel (0) target = $region9
    $region8: #{tpu_custom_call.1} parent=1 // pred_region
      %30 = vsyncadd [#allocation6], 0
      %s31 = sshll.u32 %s1, 4
      %s32 = int_to_ptr.hbm [resolvable:$true] %s31
      %s33 = sshll.u32 [#allocation5], 4
      %s34 = int_to_ptr.vmem [resolvable:$true] %s33
      %39 = dma.hbm_to_vmem [thread:$0]  %s32, 512, %s34, [#allocation6], 128, 128, 8
    $region9: #{tpu_custom_call.1} parent=1 // pred_fallthru
      _
    // Predicated region
    $region10: #{tpu_custom_call.1} parent=1 // pred_check
      _
    $region11: #{tpu_custom_call.1} parent=1 // pred_check_branch
      %41 = sbr.rel (0) target = $region13
    $region12: #{tpu_custom_call.1} parent=1 // pred_region
      %43 = vsyncadd [#allocation6], 0
      %s45 = sshll.u32 %s2, 4
      %s46 = int_to_ptr.hbm [resolvable:$true] %s45
      %s47 = sshll.u32 [#allocation7], 4
      %s48 = int_to_ptr.vmem [resolvable:$true] %s47
      %50 = dma.hbm_to_vmem [thread:$0]  %s46, 32, %s48, [#allocation6]
    $region13: #{tpu_custom_call.1} parent=1 // pred_fallthru
      _
    // Predicated region
    $region14: #{tpu_custom_call.1} parent=1 // pred_check
      _
    $region15: #{tpu_custom_call.1} parent=1 // pred_check_branch
      %52 = sbr.rel (0) target = $region17
    $region16: #{tpu_custom_call.1} parent=1 // pred_region
      %54 = vsyncadd [#allocation9], 0
      %s55 = sshll.u32 %s3, 4
      %s56 = int_to_ptr.hbm [resolvable:$true] %s55
      %s57 = sshll.u32 [#allocation8], 4
      %s58 = int_to_ptr.vmem [resolvable:$true] %s57
      %63 = dma.hbm_to_vmem [thread:$0]  %s56, 2048, %s58, [#allocation9], 64, 64, 4
    $region17: #{tpu_custom_call.1} parent=1 // pred_fallthru
      _
    // Predicated region
    $region18: #{tpu_custom_call.1} parent=1 // pred_check
      _
    $region19: #{tpu_custom_call.1} parent=1 // pred_check_branch
      %65 = sbr.rel (0) target = $region21
    $region20: #{tpu_custom_call.1} parent=1 // pred_region
      _
    $region21: #{tpu_custom_call.1} parent=1 // pred_fallthru
      _
    // Predicated region
    $region22: #{tpu_custom_call.1} parent=1 // pred_check
      _
    $region23: #{tpu_custom_call.1} parent=1 // pred_check_branch
      %67 = sbr.rel (0) target = $region25
    $region24: #{tpu_custom_call.1} parent=1 // pred_region
      %69 = dma.done [#allocation3], 128
    $region25: #{tpu_custom_call.1} parent=1 // pred_fallthru
      _
    // Predicated region
    $region26: #{tpu_custom_call.1} parent=1 // pred_check
      _
    $region27: #{tpu_custom_call.1} parent=1 // pred_check_branch
      %71 = sbr.rel (0) target = $region29
    $region28: #{tpu_custom_call.1} parent=1 // pred_region
      %73 = dma.done [#allocation6], 512
    $region29: #{tpu_custom_call.1} parent=1 // pred_fallthru
      _
    // Predicated region
    $region30: #{tpu_custom_call.1} parent=1 // pred_check
      _
    $region31: #{tpu_custom_call.1} parent=1 // pred_check_branch
      %75 = sbr.rel (0) target = $region33
    $region32: #{tpu_custom_call.1} parent=1 // pred_region
      %77 = dma.done [#allocation6], 32
    $region33: #{tpu_custom_call.1} parent=1 // pred_fallthru
      _
    // Predicated region
    $region34: #{tpu_custom_call.1} parent=1 // pred_check
      _
    $region35: #{tpu_custom_call.1} parent=1 // pred_check_branch
      %79 = sbr.rel (0) target = $region37
    $region36: #{tpu_custom_call.1} parent=1 // pred_region
      %81 = dma.done [#allocation9], 2048
    $region37: #{tpu_custom_call.1} parent=1 // pred_fallthru
      _
    %v83 = vld [vmem:[#allocation2] sm:$0xf]
    %v84 = vld [vmem:[#allocation2 + $0x4] sm:$0xf]
    %v85 = vld [vmem:[#allocation5] sm:$0xff]
    %v86 = vld [vmem:[#allocation5 + $0x8] sm:$0xff]
    %v87 = vld [vmem:[#allocation5 + $0x10] sm:$0xff]
    %v88 = vld [vmem:[#allocation5 + $0x18] sm:$0xff]
    %v89 = vld [vmem:[#allocation7] sm:$0x3]
    %v91 = vperm.slane %v89, 0
    %v92 = vperm.slane %v89, 1
    %v97 = vunpack.c.l.b16 %v83
    %v98 = vunpack.c.l.b16 %v84
    %v99 = vpack.c.b16 %v98, %v97
    %v104 = vunpack.c.l.b16 %v85
    %v105 = vunpack.c.h.b16 %v85
    %v106 = vunpack.c.l.b16 %v86
    %v107 = vunpack.c.h.b16 %v86
    %v108 = vunpack.c.l.b16 %v87
    %v109 = vunpack.c.h.b16 %v87
    %v110 = vunpack.c.l.b16 %v88
    %v111 = vunpack.c.h.b16 %v88
    %v112 = vpack.c.b16 %v106, %v104
    %v113 = vpack.c.b16 %v107, %v105
    %v114 = vpack.c.b16 %v110, %v108
    %v115 = vpack.c.b16 %v111, %v109
    %vm120 = vcmask 261120
    %v122 = vsel %vm120, %v99, 0
    %124 = vmatpush.bf16.msra.mxu0 0
    %125 = vmatpush.bf16.msra.mxu0 0
    %126 = vmatpush.bf16.msra.mxu0 0
    %127 = vmatpush.bf16.msra.mxu0 0
    %128 = vmatpush.bf16.msra.mxu0 0
    %129 = vmatpush.bf16.msra.mxu0 0
    %130 = vmatpush.bf16.msra.mxu0 %v114
    %131 = vmatpush.bf16.msra.mxu0 %v112
    %132 = vmatmul.bf16.gmra.mxu0 %v122
    %v133 = vpop.f32.mrf.mxu0
    %v134 = vadd.f32 %v91, %v133
    %v135 = vpop.f32.mrf.mxu0
    %v136 = vadd.f32 %v91, %v135
    %137 = vdwg.mxu0
    %138 = vmatpush.bf16.msra.mxu0 0
    %139 = vmatpush.bf16.msra.mxu0 0
    %140 = vmatpush.bf16.msra.mxu0 0
    %141 = vmatpush.bf16.msra.mxu0 0
    %142 = vmatpush.bf16.msra.mxu0 0
    %143 = vmatpush.bf16.msra.mxu0 0
    %144 = vmatpush.bf16.msra.mxu0 %v115
    %145 = vmatpush.bf16.msra.mxu0 %v113
    %146 = vmatmul.bf16.gmra.mxu0 %v122
    %v147 = vpop.f32.mrf.mxu0
    %v148 = vadd.f32 %v92, %v147
    %v149 = vpop.f32.mrf.mxu0
    %v150 = vadd.f32 %v92, %v149
    %151 = vdwg.mxu0
    %v152 = vmul.f32 %v134, 0.01
    %v153 = vmul.f32 %v148, 0.01
    %v154 = vmul.f32 %v136, 0.01
    %v155 = vmul.f32 %v150, 0.01
    %v156 = vmax.f32 %v134, %v152
    %v157 = vmax.f32 %v148, %v153
    %v158 = vmax.f32 %v136, %v154
    %v159 = vmax.f32 %v150, %v155
    %v160 = vpack.c.bf16 %v158, %v156
    %v161 = vpack.c.bf16 %v159, %v157
    %v162 = vld [vmem:[#allocation8] sm:$0xf]
    %v163 = vld [vmem:[#allocation8 + $0x4] sm:$0xf]
    %v164 = vld [vmem:[#allocation8 + $0x8] sm:$0xf]
    %v165 = vld [vmem:[#allocation8 + $0xc] sm:$0xf]
    %v166 = vld [vmem:[#allocation8 + $0x10] sm:$0xf]
    %v167 = vld [vmem:[#allocation8 + $0x14] sm:$0xf]
    %v168 = vld [vmem:[#allocation8 + $0x18] sm:$0xf]
    %v169 = vld [vmem:[#allocation8 + $0x1c] sm:$0xf]
    %v170 = vld [vmem:[#allocation8 + $0x20] sm:$0xf]
    %v171 = vld [vmem:[#allocation8 + $0x24] sm:$0xf]
    %v172 = vld [vmem:[#allocation8 + $0x28] sm:$0xf]
    %v173 = vld [vmem:[#allocation8 + $0x2c] sm:$0xf]
    %v174 = vld [vmem:[#allocation8 + $0x30] sm:$0xf]
    %v175 = vld [vmem:[#allocation8 + $0x34] sm:$0xf]
    %v176 = vld [vmem:[#allocation8 + $0x38] sm:$0xf]
    %v177 = vld [vmem:[#allocation8 + $0x3c] sm:$0xf]
    %v178 = vld [vmem:[#allocation8 + $0x40] sm:$0xf]
    %v179 = vld [vmem:[#allocation8 + $0x44] sm:$0xf]
    %v180 = vld [vmem:[#allocation8 + $0x48] sm:$0xf]
    %v181 = vld [vmem:[#allocation8 + $0x4c] sm:$0xf]
    %v182 = vld [vmem:[#allocation8 + $0x50] sm:$0xf]
    %v183 = vld [vmem:[#allocation8 + $0x54] sm:$0xf]
    %v184 = vld [vmem:[#allocation8 + $0x58] sm:$0xf]
    %v185 = vld [vmem:[#allocation8 + $0x5c] sm:$0xf]
    %v186 = vld [vmem:[#allocation8 + $0x60] sm:$0xf]
    %v187 = vld [vmem:[#allocation8 + $0x64] sm:$0xf]
    %v188 = vld [vmem:[#allocation8 + $0x68] sm:$0xf]
    %v189 = vld [vmem:[#allocation8 + $0x6c] sm:$0xf]
    %v190 = vld [vmem:[#allocation8 + $0x70] sm:$0xf]
    %v191 = vld [vmem:[#allocation8 + $0x74] sm:$0xf]
    %v192 = vld [vmem:[#allocation8 + $0x78] sm:$0xf]
    %v193 = vld [vmem:[#allocation8 + $0x7c] sm:$0xf]
    %v194 = vld [vmem:[%s4] sm:$0x1]
    %v196 = vperm.slane %v194, 0
    %v230 = vunpack.c.l.b16 %v162
    %v231 = vunpack.c.l.b16 %v163
    %v232 = vunpack.c.l.b16 %v164
    %v233 = vunpack.c.l.b16 %v165
    %v234 = vunpack.c.l.b16 %v166
    %v235 = vunpack.c.l.b16 %v167
    %v236 = vunpack.c.l.b16 %v168
    %v237 = vunpack.c.l.b16 %v169
    %v238 = vunpack.c.l.b16 %v170
    %v239 = vunpack.c.l.b16 %v171
    %v240 = vunpack.c.l.b16 %v172
    %v241 = vunpack.c.l.b16 %v173
    %v242 = vunpack.c.l.b16 %v174
    %v243 = vunpack.c.l.b16 %v175
    %v244 = vunpack.c.l.b16 %v176
    %v245 = vunpack.c.l.b16 %v177
    %v246 = vunpack.c.l.b16 %v178
    %v247 = vunpack.c.l.b16 %v179
    %v248 = vunpack.c.l.b16 %v180
    %v249 = vunpack.c.l.b16 %v181
    %v250 = vunpack.c.l.b16 %v182
    %v251 = vunpack.c.l.b16 %v183
    %v252 = vunpack.c.l.b16 %v184
    %v253 = vunpack.c.l.b16 %v185
    %v254 = vunpack.c.l.b16 %v186
    %v255 = vunpack.c.l.b16 %v187
    %v256 = vunpack.c.l.b16 %v188
    %v257 = vunpack.c.l.b16 %v189
    %v258 = vunpack.c.l.b16 %v190
    %v259 = vunpack.c.l.b16 %v191
    %v260 = vunpack.c.l.b16 %v192
    %v261 = vunpack.c.l.b16 %v193
    %v262 = vpack.c.b16 %v231, %v230
    %v263 = vpack.c.b16 %v233, %v232
    %v264 = vpack.c.b16 %v235, %v234
    %v265 = vpack.c.b16 %v237, %v236
    %v266 = vpack.c.b16 %v239, %v238
    %v267 = vpack.c.b16 %v241, %v240
    %v268 = vpack.c.b16 %v243, %v242
    %v269 = vpack.c.b16 %v245, %v244
    %v270 = vpack.c.b16 %v247, %v246
    %v271 = vpack.c.b16 %v249, %v248
    %v272 = vpack.c.b16 %v251, %v250
    %v273 = vpack.c.b16 %v253, %v252
    %v274 = vpack.c.b16 %v255, %v254
    %v275 = vpack.c.b16 %v257, %v256
    %v276 = vpack.c.b16 %v259, %v258
    %v277 = vpack.c.b16 %v261, %v260
    %294 = vmatpush.bf16.msra.mxu0 %v269
    %295 = vmatpush.bf16.msra.mxu0 %v268
    %296 = vmatpush.bf16.msra.mxu0 %v267
    %297 = vmatpush.bf16.msra.mxu0 %v266
    %298 = vmatpush.bf16.msra.mxu0 %v265
    %299 = vmatpush.bf16.msra.mxu0 %v264
    %300 = vmatpush.bf16.msra.mxu0 %v263
    %301 = vmatpush.bf16.msra.mxu0 %v262
    %302 = vmatmul.bf16.gmra.mxu0 %v160
    %v303 = vpop.f32.mrf.mxu0
    %v304 = vadd.f32 %v196, %v303
    %v305 = vpop.f32.mrf.mxu0
    %v306 = vadd.f32 %v196, %v305
    %307 = vdwg.mxu0
    %308 = vmatpush.bf16.msra.mxu0 %v277
    %309 = vmatpush.bf16.msra.mxu0 %v276
    %310 = vmatpush.bf16.msra.mxu0 %v275
    %311 = vmatpush.bf16.msra.mxu0 %v274
    %312 = vmatpush.bf16.msra.mxu0 %v273
    %313 = vmatpush.bf16.msra.mxu0 %v272
    %314 = vmatpush.bf16.msra.mxu0 %v271
    %315 = vmatpush.bf16.msra.mxu0 %v270
    %316 = vmatmul.bf16.gmra.mxu0 %v161
    %v317 = vpop.f32.mrf.mxu0
    %v318 = vadd.f32 %v304, %v317
    %v319 = vpop.f32.mrf.mxu0
    %v320 = vadd.f32 %v306, %v319
    %321 = vdwg.mxu0
    %v322 = vlaneseq
    %v323 = vand.u32 %v322, 127
    %vm324 = vcmp.ge.s32.totalorder %v323, 0
    %vm325 = vcmp.lt.s32.totalorder %v323, 8
    %vm326 = vmand %vm324, %vm325
    %v327 = vsel %vm326, %v318, -1e+30
    %v328 = vsel %vm326, %v320, -1e+30
    %329 = vmax.xlane.f32.xlu0 %v327
    %v330 = vpop.xlane.xlu0 %329
    %331 = vmax.xlane.f32.xlu0 %v328
    %v332 = vpop.xlane.xlu0 %331
    %v333 = vsub.f32 %v327, %v330
    %v334 = vsub.f32 %v328, %v332
    %v335 = vmul.f32 %v333, 1.442695
    %v336 = vpow.pop %v335
    %v337 = vmul.f32 %v334, 1.442695
    %v338 = vpow.pop %v337
    %339 = vadd.xlane.f32.xlu0 %v336
    %v340 = vpop.xlane.xlu0 %339
    %341 = vadd.xlane.f32.xlu0 %v338
    %v342 = vpop.xlane.xlu0 %341
    %v343 = vlog2.pop %v340
    %v344 = vmul.f32 %v343, 0.6931472
    %v345 = vlog2.pop %v342
    %v346 = vmul.f32 %v345, 0.6931472
    %v347 = vadd.f32 %v330, %v344
    %v348 = vadd.f32 %v332, %v346
    %v349 = vsub.f32 %v318, %v347
    %v350 = vsub.f32 %v320, %v348
    %v351 = vsel %vm326, %v349, %v318
    %v352 = vsel %vm326, %v350, %v320
    %vm353 = vcmp.ge.s32.totalorder %v323, 8
    %vm354 = vcmp.lt.s32.totalorder %v323, 16
    %vm355 = vmand %vm353, %vm354
    %v356 = vsel %vm355, %v318, -1e+30
    %v357 = vsel %vm355, %v320, -1e+30
    %358 = vmax.xlane.f32.xlu0 %v356
    %v359 = vpop.xlane.xlu0 %358
    %360 = vmax.xlane.f32.xlu0 %v357
    %v361 = vpop.xlane.xlu0 %360
    %v362 = vsub.f32 %v356, %v359
    %v363 = vsub.f32 %v357, %v361
    %v364 = vmul.f32 %v362, 1.442695
    %v365 = vpow.pop %v364
    %v366 = vmul.f32 %v363, 1.442695
    %v367 = vpow.pop %v366
    %368 = vadd.xlane.f32.xlu0 %v365
    %v369 = vpop.xlane.xlu0 %368
    %370 = vadd.xlane.f32.xlu0 %v367
    %v371 = vpop.xlane.xlu0 %370
    %v372 = vlog2.pop %v369
    %v373 = vmul.f32 %v372, 0.6931472
    %v374 = vlog2.pop %v371
    %v375 = vmul.f32 %v374, 0.6931472
    %v376 = vadd.f32 %v359, %v373
    %v377 = vadd.f32 %v361, %v375
    %v378 = vsub.f32 %v318, %v376
    %v379 = vsub.f32 %v320, %v377
    %v380 = vsel %vm355, %v378, %v351
    %v381 = vsel %vm355, %v379, %v352
    %382 = vst [vmem:[#allocation10] sm:$0xff] %v380
    %383 = vst [vmem:[#allocation10 + $0x8] sm:$0xff] %v381
    // Predicated region
    $region38: #{tpu_custom_call.1} parent=1 // pred_check
      _
    $region39: #{tpu_custom_call.1} parent=1 // pred_check_branch
      %385 = sbr.rel (0) target = $region41
    $region40: #{tpu_custom_call.1} parent=1 // pred_region
      %387 = vsyncadd [#allocation4], 0
      %s388 = sshll.u32 [#allocation10], 4
      %s389 = int_to_ptr.vmem [resolvable:$true] %s388
      %s390 = sshll.u32 %s5, 4
      %s391 = int_to_ptr.hbm [resolvable:$true] %s390
      %396 = dma.vmem_to_hbm [thread:$0]  %s389, 256, %s391, [#allocation4], 128, 128, 8
    $region41: #{tpu_custom_call.1} parent=1 // pred_fallthru
      _
    // Predicated region
    $region42: #{tpu_custom_call.1} parent=1 // pred_check
      _
    $region43: #{tpu_custom_call.1} parent=1 // pred_check_branch
      %398 = sbr.rel (0) target = $region45
    $region44: #{tpu_custom_call.1} parent=1 // pred_region
      %400 = dma.done [#allocation4], 256
    $region45: #{tpu_custom_call.1} parent=1 // pred_fallthru
      _
    %401 = vsyncpa [#allocation3], 1
    %402 = vsyncpa [#allocation6], 1
    %403 = vsyncpa [#allocation9], 1
    %404 = vsyncpa [#allocation4], 1

</llo_original>
